<compile_context>
chip_gen: v6e
topology: v6e:2x2x1
jax: 0.10.0
libtpu: 0.0.40
codegen_flags: <defaults>
</compile_context>

<pallas_src>
import numpy as np
import jax
import jax.numpy as jnp
from jax.experimental import pallas as pl
from jax.experimental.pallas import tpu as pltpu

DIM = 2


def _init_params(dim):
    # Deterministic parameter init, matching the nn.Module __init__.
    h_bandwidth = np.full((dim, dim), 0.05) + np.eye(dim)
    init_cov = np.eye(dim)
    L = np.linalg.cholesky(init_cov)
    cov = L @ L.T
    cov_inv = np.linalg.inv(cov)
    # h_bandwidth / L only matter through cov_inv for forward()'s return value.
    return h_bandwidth, L, cov_inv


def _build_geometry(shape):
    """Mirror torch's _mahalanobis_distance coordinate handling, including the
    raw (dim, *shape) -> (-1, dim) reshape (which mixes coordinate planes
    instead of transposing)."""
    dim = len(shape)
    P = int(np.prod(shape))
    grids = np.meshgrid(*[np.arange(k) for k in shape], indexing="ij")
    stacked = np.stack(grids, axis=0).astype(np.float64)          # (dim, *shape)
    rows = stacked.reshape(-1).reshape(P, dim)                    # reshaped element values
    comp = (np.arange(dim * P) // P).reshape(P, dim)              # source coord plane per element
    q_coords = np.stack(grids, axis=-1).reshape(P, dim).astype(np.float64)
    return rows, comp, q_coords


def _precompute_affine(shape, cov_inv):
    """Fold -0.5*(rows[r]-q)^T cov_inv (rows[r]-q) into
       z[r, v] = A[r] + B[r]*v + G*v^2   (all host-side, float64)."""
    rows, comp, _ = _build_geometry(shape)
    P, dim = rows.shape
    assert dim == DIM
    Ph = P // 2
    # Separable folding requires: both reshaped components of a row use the
    # same query coordinate, and the halves are plane-pure (true for dim==2
    # with even P).
    assert P % 2 == 0 and np.all(comp[:, 0] == comp[:, 1])
    assert np.all(comp[:Ph, 0] == 0) and np.all(comp[Ph:, 0] == 1)
    c00, c01, c10, c11 = cov_inv[0, 0], cov_inv[0, 1], cov_inv[1, 0], cov_inv[1, 1]
    s01 = c01 + c10
    r0, r1 = rows[:, 0], rows[:, 1]
    A = -0.5 * (c00 * r0 * r0 + s01 * r0 * r1 + c11 * r1 * r1)    # (P,)  constant term
    B = c00 * r0 + c11 * r1 + 0.5 * s01 * (r0 + r1)               # (P,)  linear-in-v term
    G = -0.5 * (c00 + s01 + c11)                                  # scalar quadratic-in-v coeff
    return A, B, float(G)


def _kde_kernel(qv_ref, qg_ref, a_ref, b_ref, x_ref, f_ref):
    # grid = (plane, reduction tiles); reduction axis innermost, the output
    # block (constant over it) doubles as the f32 accumulator.
    k = pl.program_id(1)

    @pl.when(k == 0)
    def _():
        f_ref[...] = jnp.zeros_like(f_ref)

    qv = qv_ref[...]                       # (1, V)   query coordinate values
    qg = qg_ref[...]                       # (1, V)   folded quadratic term G*v^2
    a = a_ref[0]                           # (TK, 1)  per-source constant term
    b = b_ref[0]                           # (TK, 1)  per-source linear term
    # z = -0.5 * Mahalanobis^2 ; the 1/sqrt(2*pi) factor cancels in the final
    # normalization and sqrt-then-square is removed -> exp is the only EUP op.
    w = jnp.exp(a + b * qv + qg)           # (TK, V)
    f_ref[...] += jnp.dot(x_ref[0], w, preferred_element_type=jnp.float32)[None]


def kde_mahalanobis_forward(sample_distributions, *, tk=512):
    """sample_distributions: (N, H, W) float32.  Returns (H, W) float32,
    matching the PyTorch module's return value (normalized KDE of the last
    distribution)."""
    shape = tuple(sample_distributions.shape[1:])
    # TODO(synk): kernel instantiation assumes dim == 2 (even H*W); the module's
    # general-dim path would need a different (non-separable) folding.
    assert len(shape) == DIM, "this kernel instantiation assumes dim == 2"
    H, W = shape
    P = H * W
    assert P % 2 == 0
    Ph = P // 2

    _, _, cov_inv = _init_params(DIM)
    A, B, G = _precompute_affine(shape, cov_inv)

    def _rup(x, m):
        return ((x + m - 1) // m) * m

    # Lane axis: coordinate values 0..max(H,W)-1, padded to a multiple of 128.
    V = _rup(max(H, W), 128)
    # Sublane/reduction axis: half-length source rows, padded to a multiple of tk.
    tk = min(int(tk), _rup(Ph, 128))
    tk = max(128, (tk // 128) * 128)
    Phk = _rup(Ph, tk)
    nk = Phk // tk

    # Host-side constant operands (padded rows: exp(A_pad) == 0, x_pad == 0).
    A_pad = np.full((2, Phk, 1), -1e30, dtype=np.float32)
    B_pad = np.zeros((2, Phk, 1), dtype=np.float32)
    A_pad[0, :Ph, 0] = A[:Ph]
    A_pad[1, :Ph, 0] = A[Ph:]
    B_pad[0, :Ph, 0] = B[:Ph]
    B_pad[1, :Ph, 0] = B[Ph:]
    v = np.arange(V, dtype=np.float64)
    qv = v.reshape(1, V).astype(np.float32)
    qg = (G * v * v).reshape(1, V).astype(np.float32)

    # Last distribution, flattened row-major and split into the two plane halves.
    x = sample_distributions[-1].reshape(P).astype(jnp.float32)
    x2 = x.reshape(2, Ph)
    if Phk > Ph:
        x2 = jnp.pad(x2, ((0, 0), (0, Phk - Ph)))
    x2 = x2.reshape(2, 1, Phk)

    F = pl.pallas_call(
        _kde_kernel,
        out_shape=jax.ShapeDtypeStruct((2, 1, V), jnp.float32),
        grid_spec=pltpu.PrefetchScalarGridSpec(
            num_scalar_prefetch=0,
            grid=(2, nk),
            in_specs=[
                pl.BlockSpec((1, V), lambda p, k: (0, 0)),         # qv
                pl.BlockSpec((1, V), lambda p, k: (0, 0)),         # qg (= G*v^2)
                pl.BlockSpec((1, tk, 1), lambda p, k: (p, k, 0)),  # A
                pl.BlockSpec((1, tk, 1), lambda p, k: (p, k, 0)),  # B
                pl.BlockSpec((1, 1, tk), lambda p, k: (p, 0, k)),  # x
            ],
            out_specs=pl.BlockSpec((1, 1, V), lambda p, k: (p, 0, 0)),
        ),
        compiler_params=pltpu.CompilerParams(
            dimension_semantics=("parallel", "arbitrary")),
    )(jnp.asarray(qv), jnp.asarray(qg), jnp.asarray(A_pad), jnp.asarray(B_pad), x2)

    # O(P) epilogue: kde[i, j] = F0[i] + F1[j]; then the global normalization
    # (needs the whole finished grid) -> matches kde /= kde.sum().
    F0 = F[0, 0, :H]                       # (H,)
    F1 = F[1, 0, :W]                       # (W,)
    kde = F0[:, None] + F1[None, :]        # (H, W)
    return kde / jnp.sum(kde)


def _reference(sample_distributions_np):
    """Pure NumPy re-implementation of the torch forward (for self-check)."""
    shape = sample_distributions_np.shape[1:]
    P = int(np.prod(shape))
    rows, comp, qc = _build_geometry(shape)
    _, _, cinv = _init_params(len(shape))
    x = sample_distributions_np[-1].reshape(P).astype(np.float64)
    comp_i = comp.astype(np.int64)
    d = rows[None, :, :] - qc[:, comp_i]             # (P, P, dim)
    dsq = np.einsum("qri,ij,qrj->qr", d, cinv, d)
    w = np.exp(-0.5 * np.sqrt(dsq) ** 2) / np.sqrt(2.0 * np.pi)
    kde = w @ x
    return (kde / kde.sum()).reshape(shape)


if __name__ == "__main__":
    key = jax.random.PRNGKey(0)
    N, H, W = 3, 16, 16
    sample_distributions = jax.random.uniform(key, (N, H, W), dtype=jnp.float32)

    out = kde_mahalanobis_forward(sample_distributions)
    out = jax.block_until_ready(out)

    ref = _reference(np.asarray(sample_distributions))
    np.testing.assert_allclose(np.asarray(out), ref, rtol=1e-4, atol=1e-7)

    print("KERNEL_OK")
</pallas_src>

<mosaic_0001>
module attributes {stable_mosaic.version = 11 : i64} {
  func.func @_kde_kernel(%arg0: i32, %arg1: i32, %arg2: memref<1x128xf32, #tpu.memory_space<vmem>>, %arg3: memref<1x128xf32, #tpu.memory_space<vmem>>, %arg4: memref<1x128x1xf32, #tpu.memory_space<vmem>>, %arg5: memref<1x128x1xf32, #tpu.memory_space<vmem>>, %arg6: memref<1x1x128xf32, #tpu.memory_space<vmem>>, %arg7: memref<1x1x128xf32, #tpu.memory_space<vmem>>) attributes {dimension_semantics = [#tpu.dimension_semantics<parallel>, #tpu.dimension_semantics<arbitrary>], iteration_bounds = array<i64: 2, 1>, scalar_prefetch = 0 : i64, scratch_operands = 0 : i64, tpu.core_type = #tpu.core_type<tc>, window_params = [{pipeline_mode = #tpu.pipeline_mode<synchronous>, transform_indices = @transform_0, window_bounds = array<i64: 1, 128>}, {pipeline_mode = #tpu.pipeline_mode<synchronous>, transform_indices = @transform_1, window_bounds = array<i64: 1, 128>}, {transform_indices = @transform_2, window_bounds = array<i64: 1, 128, 1>}, {transform_indices = @transform_3, window_bounds = array<i64: 1, 128, 1>}, {transform_indices = @transform_4, window_bounds = array<i64: 1, 1, 128>}, {transform_indices = @transform_5, window_bounds = array<i64: 1, 1, 128>}]} {
    %c0_i32 = arith.constant 0 : i32
    %0 = arith.cmpi eq, %arg1, %c0_i32 : i32
    %1 = arith.extui %0 : i1 to i32
    %c0_i32_0 = arith.constant 0 : i32
    %2 = arith.cmpi ne, %1, %c0_i32_0 : i32
    scf.if %2 {
      %cst_19 = arith.constant 0.000000e+00 : f32
      %24 = vector.broadcast %cst_19 : f32 to vector<1x1x128xf32>
      %c0_20 = arith.constant 0 : index
      %c0_21 = arith.constant 0 : index
      %c0_22 = arith.constant 0 : index
      %25 = vector.load %arg7[%c0_20, %c0_21, %c0_22] : memref<1x1x128xf32, #tpu.memory_space<vmem>>, vector<1x1x128xf32>
      tpu.vector_store %arg7[%c0_20, %c0_21, %c0_22], %24 {strides = array<i32>} : memref<1x1x128xf32, #tpu.memory_space<vmem>>, vector<1x1x128xf32>,
    } else {
    }
    %c0 = arith.constant 0 : index
    %c0_1 = arith.constant 0 : index
    %3 = vector.load %arg2[%c0, %c0_1] : memref<1x128xf32, #tpu.memory_space<vmem>>, vector<1x128xf32>
    %c0_2 = arith.constant 0 : index
    %c0_3 = arith.constant 0 : index
    %4 = vector.load %arg3[%c0_2, %c0_3] : memref<1x128xf32, #tpu.memory_space<vmem>>, vector<1x128xf32>
    %c0_4 = arith.constant 0 : index
    %c0_5 = arith.constant 0 : index
    %c0_6 = arith.constant 0 : index
    %5 = vector.load %arg4[%c0_4, %c0_5, %c0_6] : memref<1x128x1xf32, #tpu.memory_space<vmem>>, vector<1x128x1xf32>
    %6 = vector.shape_cast %5 : vector<1x128x1xf32> to vector<128x1xf32>
    %c0_7 = arith.constant 0 : index
    %c0_8 = arith.constant 0 : index
    %c0_9 = arith.constant 0 : index
    %7 = vector.load %arg5[%c0_7, %c0_8, %c0_9] : memref<1x128x1xf32, #tpu.memory_space<vmem>>, vector<1x128x1xf32>
    %8 = vector.shape_cast %7 : vector<1x128x1xf32> to vector<128x1xf32>
    %9 = vector.broadcast %8 : vector<128x1xf32> to vector<128x128xf32>
    %10 = vector.broadcast %3 : vector<1x128xf32> to vector<128x128xf32>
    %11 = arith.mulf %9, %10 : vector<128x128xf32>
    %12 = vector.broadcast %6 : vector<128x1xf32> to vector<128x128xf32>
    %13 = arith.addf %12, %11 : vector<128x128xf32>
    %14 = vector.broadcast %4 : vector<1x128xf32> to vector<128x128xf32>
    %15 = arith.addf %13, %14 : vector<128x128xf32>
    %16 = math.exp %15 : vector<128x128xf32>
    %c0_10 = arith.constant 0 : index
    %c0_11 = arith.constant 0 : index
    %c0_12 = arith.constant 0 : index
    %17 = vector.load %arg7[%c0_10, %c0_11, %c0_12] : memref<1x1x128xf32, #tpu.memory_space<vmem>>, vector<1x1x128xf32>
    %c0_13 = arith.constant 0 : index
    %c0_14 = arith.constant 0 : index
    %c0_15 = arith.constant 0 : index
    %18 = vector.load %arg6[%c0_13, %c0_14, %c0_15] : memref<1x1x128xf32, #tpu.memory_space<vmem>>, vector<1x1x128xf32>
    %19 = vector.shape_cast %18 : vector<1x1x128xf32> to vector<1x128xf32>
    %cst = arith.constant dense<0.000000e+00> : vector<1x128xf32>
    %20 = tpu.matmul %19, %16, %cst {dimension_numbers = #tpu.dot_dimension_numbers<[1], [0], [0], [1], [0, 0, 1, 1], [], []>} : vector<1x128xf32>, vector<128x128xf32>, vector<1x128xf32> -> vector<1x128xf32>
    %21 = vector.shape_cast %20 : vector<1x128xf32> to vector<1x1x128xf32>
    %22 = arith.addf %17, %21 : vector<1x1x128xf32>
    %c0_16 = arith.constant 0 : index
    %c0_17 = arith.constant 0 : index
    %c0_18 = arith.constant 0 : index
    %23 = vector.load %arg7[%c0_16, %c0_17, %c0_18] : memref<1x1x128xf32, #tpu.memory_space<vmem>>, vector<1x1x128xf32>
    tpu.vector_store %arg7[%c0_16, %c0_17, %c0_18], %22 {strides = array<i32>} : memref<1x1x128xf32, #tpu.memory_space<vmem>>, vector<1x1x128xf32>,
    return
  }
  func.func @transform_0(%arg0: i32, %arg1: i32) -> (i32, i32) {
    %c0_i32 = arith.constant 0 : i32
    %c0_i32_0 = arith.constant 0 : i32
    %c0_i32_1 = arith.constant 0 : i32
    return %c0_i32, %c0_i32_0 : i32, i32
  }
  func.func @transform_1(%arg0: i32, %arg1: i32) -> (i32, i32) {
    %c0_i32 = arith.constant 0 : i32
    %c0_i32_0 = arith.constant 0 : i32
    %c0_i32_1 = arith.constant 0 : i32
    return %c0_i32, %c0_i32_0 : i32, i32
  }
  func.func @transform_2(%arg0: i32, %arg1: i32) -> (i32, i32, i32) {
    %c0_i32 = arith.constant 0 : i32
    %c0_i32_0 = arith.constant 0 : i32
    return %arg0, %arg1, %c0_i32 : i32, i32, i32
  }
  func.func @transform_3(%arg0: i32, %arg1: i32) -> (i32, i32, i32) {
    %c0_i32 = arith.constant 0 : i32
    %c0_i32_0 = arith.constant 0 : i32
    return %arg0, %arg1, %c0_i32 : i32, i32, i32
  }
  func.func @transform_4(%arg0: i32, %arg1: i32) -> (i32, i32, i32) {
    %c0_i32 = arith.constant 0 : i32
    %c0_i32_0 = arith.constant 0 : i32
    return %arg0, %c0_i32, %arg1 : i32, i32, i32
  }
  func.func @transform_5(%arg0: i32, %arg1: i32) -> (i32, i32, i32) {
    %c0_i32 = arith.constant 0 : i32
    %c0_i32_0 = arith.constant 0 : i32
    %c0_i32_1 = arith.constant 0 : i32
    return %arg0, %c0_i32, %c0_i32_0 : i32, i32, i32
  }
}

</mosaic_0001>

<llo_original>
// kernel: tpu_custom_call.1
$region0: #{tpu_custom_call.1}
  #allocation0 [shape = 'u32[]', space=smem, size = 0x4, offset = 0x4, fixed_abs, tag = 'smem constant byte address 0x4 - core index']
  #allocation1 [shape = 'u32[144,128]{1,0:T(1,128)}', space=vmem, size = 0x12000, scoped, tag = 'internal scratch']
  %s0 = inlined_call_operand.vmem [shape: f32[1,128], index: 0, kind: input, shape index: {}]
  %s1 = inlined_call_operand.vmem [shape: f32[1,128], index: 1, kind: input, shape index: {}]
  %s2 = inlined_call_operand.vmem [shape: f32[2,128,1], index: 2, kind: input, shape index: {}]
  %s3 = inlined_call_operand.vmem [shape: f32[2,128,1], index: 3, kind: input, shape index: {}]
  %s4 = inlined_call_operand.vmem [shape: f32[2,1,128], index: 4, kind: input, shape index: {}]
  %s5 = inlined_call_operand.hbm [shape: f32[2,1,128], index: 5, kind: output, shape index: {}]
  %s6 = sld [smem:[#allocation0]]
  $region57: #{tpu_custom_call.1} parent=0
    _
  %s8 = ssub.s32 1, %s6
  %s9 = scalar_select 0, %s8, %s6
  $region1: #{tpu_custom_call.1} parent=0
    #allocation2 [shape = 'u8[1024]{0}', space=vmem, size = 0x400, scoped, tag = 'output window, operand 0']
    #allocation3 [shape = 's32[2]{0}', space=sflag, size = 0x8, scoped, tag = 'scoped memory for tpu_custom_call.1']
    %10 = vsyncpa [#allocation3], 0
    %s11 = scalar_lea.sflag [#allocation3], 1
    %12 = vsyncpa %s11, 0
    loop: start=0, step=1, limit=4
    $region2: #{tpu_custom_call.1} parent=1 // loop_pre_header
      _
    $region3: #{tpu_custom_call.1} parent=1 // loop_header
      %s14 = sphi 0, %s18
      %p15 = scmp.ge.s32.totalorder %s14, 4
      %s21 = sphi 0, %s33
      %s22 = sphi 0, %s29
      %s23 = sphi 0, %s21
      %s24 = sphi 0, %s22
      %s25 = sphi 0, %s23
      %s26 = sphi 0, %s24
      %s34 = sphi 0, %s34
      %s36 = sphi 0, %s34
      %s37 = sphi 0, %s36
      %s51 = sphi 0, %s37
      %s55 = sphi 0, %s55
      %s57 = sphi 0, %s55
      %s58 = sphi 0, %s57
      %s72 = sphi 0, %s58
      %s80 = sphi 0, %s82
      %s83 = sphi 0, %s80
      %s84 = sphi 0, %s83
      %s100 = sphi 0, %s84
      %s108 = sphi 0, %s110
      %s111 = sphi 0, %s108
      %s112 = sphi 0, %s111
      %s128 = sphi 0, %s112
      %s136 = sphi 0, %s138
      %s139 = sphi 0, %s136
      %s140 = sphi 0, %s139
      %s156 = sphi 0, %s140
      %s162 = sphi 0, %s164
      %s165 = sphi 0, %s162
      %s166 = sphi 0, %s165
      %s182 = sphi 0, %s166
    $region4: #{tpu_custom_call.1} parent=1 // loop_header_branch
      %17 = sbr.rel (%p15) target = $region8
    $region5: #{tpu_custom_call.1} parent=1 // loop_body
      %s19 = ssub.s32 %s14, 1
      %s20 = ssub.s32 %s14, 2
      %s27 = sadd.s32 1, %s22
      %p28 = scmp.ge.s32.totalorder %s27, 1
      %s29 = scalar_select %p28, 0, %s27
      %s30 = sadd.s32 1, %s21
      %s31 = scalar_select %p28, %s30, %s21
      %p32 = scmp.ge.s32.totalorder %s31, 2
      %s33 = scalar_select %p32, 0, %s31
      %s35 = sadd.s32 %s34, 1
      %p38 = scmp.eq.s32.totalorder %s14, 1
      %p39 = scmp.ne.s32.totalorder %s34, %s36
      %p40 = scmp.eq.s32.totalorder %s14, 0
      %p41 = por %p39, %p40
      %p42 = scmp.ne.s32.totalorder %s34, %s36
      %p43 = scmp.eq.s32.totalorder %s19, 1
      %p44 = por %p42, %p43
      %p45 = scmp.ne.s32.totalorder %s36, %s37
      %p46 = scmp.eq.s32.totalorder %s19, 0
      %p47 = por %p45, %p46
      %p48 = scmp.ne.s32.totalorder %s36, %s37
      %p49 = scmp.eq.s32.totalorder %s20, 1
      %p50 = por %p48, %p49
      %p52 = scmp.ne.s32.totalorder %s37, %s51
      %p53 = scmp.eq.s32.totalorder %s20, 0
      %p54 = por %p52, %p53
      %s56 = sadd.s32 %s55, 1
      %p59 = scmp.eq.s32.totalorder %s14, 1
      %p60 = scmp.ne.s32.totalorder %s55, %s57
      %p61 = scmp.eq.s32.totalorder %s14, 0
      %p62 = por %p60, %p61
      %p63 = scmp.ne.s32.totalorder %s55, %s57
      %p64 = scmp.eq.s32.totalorder %s19, 1
      %p65 = por %p63, %p64
      %p66 = scmp.ne.s32.totalorder %s57, %s58
      %p67 = scmp.eq.s32.totalorder %s19, 0
      %p68 = por %p66, %p67
      %p69 = scmp.ne.s32.totalorder %s57, %s58
      %p70 = scmp.eq.s32.totalorder %s20, 1
      %p71 = por %p69, %p70
      %p73 = scmp.ne.s32.totalorder %s58, %s72
      %p74 = scmp.eq.s32.totalorder %s20, 0
      %p75 = por %p73, %p74
      %s76 = ssub.s32 %s21, %s33
      %s77 = ssub.s32 %s22, %s29
      %s78 = sor.u32 %s76, %s77
      %p79 = scmp.eq.s32.totalorder %s78, 0
      %s81 = sadd.s32 %s80, 1
      %s82 = scalar_select %p79, %s80, %s81
      %p85 = pneg %p79
      %p86 = scmp.eq.s32.totalorder %s14, 1
      %p87 = por %p85, %p86
      %p88 = scmp.ne.s32.totalorder %s80, %s83
      %p89 = scmp.eq.s32.totalorder %s14, 0
      %p90 = por %p88, %p89
      %p91 = scmp.ne.s32.totalorder %s80, %s83
      %p92 = scmp.eq.s32.totalorder %s19, 1
      %p93 = por %p91, %p92
      %p94 = scmp.ne.s32.totalorder %s83, %s84
      %p95 = scmp.eq.s32.totalorder %s19, 0
      %p96 = por %p94, %p95
      %p97 = scmp.ne.s32.totalorder %s83, %s84
      %p98 = scmp.eq.s32.totalorder %s20, 1
      %p99 = por %p97, %p98
      %p101 = scmp.ne.s32.totalorder %s84, %s100
      %p102 = scmp.eq.s32.totalorder %s20, 0
      %p103 = por %p101, %p102
      %s104 = ssub.s32 %s21, %s33
      %s105 = ssub.s32 %s22, %s29
      %s106 = sor.u32 %s104, %s105
      %p107 = scmp.eq.s32.totalorder %s106, 0
      %s109 = sadd.s32 %s108, 1
      %s110 = scalar_select %p107, %s108, %s109
      %p113 = pneg %p107
      %p114 = scmp.eq.s32.totalorder %s14, 1
      %p115 = por %p113, %p114
      %p116 = scmp.ne.s32.totalorder %s108, %s111
      %p117 = scmp.eq.s32.totalorder %s14, 0
      %p118 = por %p116, %p117
      %p119 = scmp.ne.s32.totalorder %s108, %s111
      %p120 = scmp.eq.s32.totalorder %s19, 1
      %p121 = por %p119, %p120
      %p122 = scmp.ne.s32.totalorder %s111, %s112
      %p123 = scmp.eq.s32.totalorder %s19, 0
      %p124 = por %p122, %p123
      %p125 = scmp.ne.s32.totalorder %s111, %s112
      %p126 = scmp.eq.s32.totalorder %s20, 1
      %p127 = por %p125, %p126
      %p129 = scmp.ne.s32.totalorder %s112, %s128
      %p130 = scmp.eq.s32.totalorder %s20, 0
      %p131 = por %p129, %p130
      %s132 = ssub.s32 %s21, %s33
      %s133 = ssub.s32 %s22, %s29
      %s134 = sor.u32 %s132, %s133
      %p135 = scmp.eq.s32.totalorder %s134, 0
      %s137 = sadd.s32 %s136, 1
      %s138 = scalar_select %p135, %s136, %s137
      %p141 = pneg %p135
      %p142 = scmp.eq.s32.totalorder %s14, 1
      %p143 = por %p141, %p142
      %p144 = scmp.ne.s32.totalorder %s136, %s139
      %p145 = scmp.eq.s32.totalorder %s14, 0
      %p146 = por %p144, %p145
      %p147 = scmp.ne.s32.totalorder %s136, %s139
      %p148 = scmp.eq.s32.totalorder %s19, 1
      %p149 = por %p147, %p148
      %p150 = scmp.ne.s32.totalorder %s139, %s140
      %p151 = scmp.eq.s32.totalorder %s19, 0
      %p152 = por %p150, %p151
      %p153 = scmp.ne.s32.totalorder %s139, %s140
      %p154 = scmp.eq.s32.totalorder %s20, 1
      %p155 = por %p153, %p154
      %p157 = scmp.ne.s32.totalorder %s140, %s156
      %p158 = scmp.eq.s32.totalorder %s20, 0
      %p159 = por %p157, %p158
      %s160 = ssub.s32 %s21, %s33
      %p161 = scmp.eq.s32.totalorder %s160, 0
      %s163 = sadd.s32 %s162, 1
      %s164 = scalar_select %p161, %s162, %s163
      %p167 = pneg %p161
      %p168 = scmp.eq.s32.totalorder %s14, 1
      %p169 = por %p167, %p168
      %p170 = scmp.ne.s32.totalorder %s162, %s165
      %p171 = scmp.eq.s32.totalorder %s14, 0
      %p172 = por %p170, %p171
      %p173 = scmp.ne.s32.totalorder %s162, %s165
      %p174 = scmp.eq.s32.totalorder %s19, 1
      %p175 = por %p173, %p174
      %p176 = scmp.ne.s32.totalorder %s165, %s166
      %p177 = scmp.eq.s32.totalorder %s19, 0
      %p178 = por %p176, %p177
      %p179 = scmp.ne.s32.totalorder %s165, %s166
      %p180 = scmp.eq.s32.totalorder %s20, 1
      %p181 = por %p179, %p180
      %p183 = scmp.ne.s32.totalorder %s166, %s182
      %p184 = scmp.eq.s32.totalorder %s20, 0
      %p185 = por %p183, %p184
      %p186 = scmp.le.s32.totalorder 1, %s14
      %p187 = scmp.lt.s32.totalorder %s14, 3
      %p188 = pnand %p186, %p187
      %p189 = pneg %p188
      // Predicated region
      $region9: #{tpu_custom_call.1} parent=5 // pred_check
        _
      $region10: #{tpu_custom_call.1} parent=5 // pred_check_branch
        %191 = sbr.rel (%p188) target = $region12
      $region11: #{tpu_custom_call.1} parent=5 // pred_region
        %s192 = ssub.s32 %s14, 1
        // Predicated region
        $region13: #{tpu_custom_call.1} parent=11 // pred_check
          %p193 = pneg %p47
        $region14: #{tpu_custom_call.1} parent=11 // pred_check_branch
          %195 = sbr.rel (%p193) target = $region16
        $region15: #{tpu_custom_call.1} parent=11 // pred_region
          _
        $region16: #{tpu_custom_call.1} parent=11 // pred_fallthru
          _
        // Predicated region
        $region17: #{tpu_custom_call.1} parent=11 // pred_check
          %p196 = pneg %p68
        $region18: #{tpu_custom_call.1} parent=11 // pred_check_branch
          %198 = sbr.rel (%p196) target = $region20
        $region19: #{tpu_custom_call.1} parent=11 // pred_region
          _
        $region20: #{tpu_custom_call.1} parent=11 // pred_fallthru
          _
      $region12: #{tpu_custom_call.1} parent=5 // pred_fallthru
        _
      %p199 = scmp.lt.s32.totalorder %s14, 2
      // Predicated region
      $region21: #{tpu_custom_call.1} parent=5 // pred_check
        %p200 = pneg %p199
      $region22: #{tpu_custom_call.1} parent=5 // pred_check_branch
        %202 = sbr.rel (%p200) target = $region24
      $region23: #{tpu_custom_call.1} parent=5 // pred_region
        // Predicated region
        $region25: #{tpu_custom_call.1} parent=23 // pred_check
          %p203 = pneg %p90
        $region26: #{tpu_custom_call.1} parent=23 // pred_check_branch
          %205 = sbr.rel (%p203) target = $region28
        $region27: #{tpu_custom_call.1} parent=23 // pred_region
          %s206 = smul.u32 16, %s22
          %p207 = scmp.lt.s32.totalorder %s21, 1
          %s208 = scalar_select %p207, %s21, 1
          %p209 = scmp.lt.s32.totalorder %s206, 15
          %s210 = scalar_select %p209, %s206, 15
          %s211 = smul.addr %s208, 16
          %s212 = sadd.s32 %s210, %s211
          %s213 = smul.addr %s212, 8
          %s214 = scalar_lea.vmem %s2, %s213
          %s215 = smul.u32 16, %s22
        $region28: #{tpu_custom_call.1} parent=23 // pred_fallthru
          _
        // Predicated region
        $region29: #{tpu_custom_call.1} parent=23 // pred_check
          %p216 = pneg %p118
        $region30: #{tpu_custom_call.1} parent=23 // pred_check_branch
          %218 = sbr.rel (%p216) target = $region32
        $region31: #{tpu_custom_call.1} parent=23 // pred_region
          %s219 = smul.u32 16, %s22
          %p220 = scmp.lt.s32.totalorder %s21, 1
          %s221 = scalar_select %p220, %s21, 1
          %p222 = scmp.lt.s32.totalorder %s219, 15
          %s223 = scalar_select %p222, %s219, 15
          %s224 = smul.addr %s221, 16
          %s225 = sadd.s32 %s223, %s224
          %s226 = smul.addr %s225, 8
          %s227 = scalar_lea.vmem %s3, %s226
          %s228 = smul.u32 16, %s22
        $region32: #{tpu_custom_call.1} parent=23 // pred_fallthru
          _
        // Predicated region
        $region33: #{tpu_custom_call.1} parent=23 // pred_check
          %p229 = pneg %p146
        $region34: #{tpu_custom_call.1} parent=23 // pred_check_branch
          %231 = sbr.rel (%p229) target = $region36
        $region35: #{tpu_custom_call.1} parent=23 // pred_region
          %p232 = scmp.lt.s32.totalorder %s21, 1
          %s233 = scalar_select %p232, %s21, 1
          %p234 = scmp.lt.s32.totalorder %s22, 0
          %s235 = scalar_select %p234, %s22, 0
          %s236 = sadd.s32 %s235, %s233
          %s237 = scalar_lea.vmem %s4, %s236
        $region36: #{tpu_custom_call.1} parent=23 // pred_fallthru
          _
      $region24: #{tpu_custom_call.1} parent=5 // pred_fallthru
        _
      %p238 = scmp.le.s32.totalorder 1, %s14
      %p239 = scmp.lt.s32.totalorder %s14, 3
      %p240 = pnand %p238, %p239
      %p241 = pneg %p240
      // Predicated region
      $region37: #{tpu_custom_call.1} parent=5 // pred_check
        _
      $region38: #{tpu_custom_call.1} parent=5 // pred_check_branch
        %243 = sbr.rel (%p240) target = $region40
      $region39: #{tpu_custom_call.1} parent=5 // pred_region
        %s244 = ssub.s32 %s14, 1
        %p245 = pneg %p47
        %p246 = pneg %p44
        %p247 = pneg %p68
        %p248 = pneg %p65
        %s249 = smul.u32 16, %s24
        %p250 = scmp.lt.s32.totalorder %s23, 1
        %s251 = scalar_select %p250, %s23, 1
        %p252 = scmp.lt.s32.totalorder %s249, 15
        %s253 = scalar_select %p252, %s249, 15
        %s254 = smul.addr %s251, 16
        %s255 = sadd.s32 %s253, %s254
        %s256 = smul.addr %s255, 8
        %s257 = scalar_lea.vmem %s2, %s256
        %p258 = pneg %p96
        %p259 = pneg %p93
        %s260 = smul.u32 16, %s24
        %p261 = scmp.lt.s32.totalorder %s23, 1
        %s262 = scalar_select %p261, %s23, 1
        %p263 = scmp.lt.s32.totalorder %s260, 15
        %s264 = scalar_select %p263, %s260, 15
        %s265 = smul.addr %s262, 16
        %s266 = sadd.s32 %s264, %s265
        %s267 = smul.addr %s266, 8
        %s268 = scalar_lea.vmem %s3, %s267
        %p269 = pneg %p124
        %p270 = pneg %p121
        %p271 = scmp.lt.s32.totalorder %s23, 1
        %s272 = scalar_select %p271, %s23, 1
        %p273 = scmp.lt.s32.totalorder %s24, 0
        %s274 = scalar_select %p273, %s24, 0
        %s275 = sadd.s32 %s274, %s272
        %s276 = scalar_lea.vmem %s4, %s275
        %p277 = pneg %p152
        %p278 = pneg %p149
        %p279 = pneg %p178
        %p280 = pneg %p175
        %s281 = sand.u32 %s165, 1
        %s282 = scalar_lea.sflag [#allocation3], %s281
        %s283 = sand.u32 %s165, 1
        %s284 = scalar_lea.vmem [#allocation2], %s283
        %s285 = smul.u32 16, %s24
        %p286 = scmp.lt.s32.totalorder %s23, 1
        %s287 = scalar_select %p286, %s23, 1
        %p288 = scmp.lt.s32.totalorder %s285, 15
        %s289 = scalar_select %p288, %s285, 15
        %s290 = smul.addr %s287, 16
        %s291 = sadd.s32 %s289, %s290
        %s292 = smul.addr %s291, 8
        %s293 = scalar_lea.vmem %s2, %s292
        %s294 = smul.u32 16, %s24
        %s295 = smul.u32 16, %s24
        %p296 = scmp.lt.s32.totalorder %s23, 1
        %s297 = scalar_select %p296, %s23, 1
        %p298 = scmp.lt.s32.totalorder %s295, 15
        %s299 = scalar_select %p298, %s295, 15
        %s300 = smul.addr %s297, 16
        %s301 = sadd.s32 %s299, %s300
        %s302 = smul.addr %s301, 8
        %s303 = scalar_lea.vmem %s3, %s302
        %s304 = smul.u32 16, %s24
        %p305 = scmp.lt.s32.totalorder %s23, 1
        %s306 = scalar_select %p305, %s23, 1
        %p307 = scmp.lt.s32.totalorder %s24, 0
        %s308 = scalar_select %p307, %s24, 0
        %s309 = sadd.s32 %s308, %s306
        %s310 = scalar_lea.vmem %s4, %s309
        %p311 = scmp.eq.s32.totalorder %s24, 0
        // Predicated region
        $region41: #{tpu_custom_call.1} parent=39 // pred_check
          %p312 = pneg %p311
        $region42: #{tpu_custom_call.1} parent=39 // pred_check_branch
          %314 = sbr.rel (%p312) target = $region44
        $region43: #{tpu_custom_call.1} parent=39 // pred_region
          %315 = vst [vmem:[%s284] sm:$0x1] 0.0
        $region44: #{tpu_custom_call.1} parent=39 // pred_fallthru
          _
        %v316 = vld [vmem:[%s0] sm:$0x1]
        %v317 = vld [vmem:[%s1] sm:$0x1]
        %v318 = vld [vmem:[%s293] sm:$0xff]
        %v319 = vld [vmem:[%s293 + $0x8] sm:$0xff]
        %v320 = vld [vmem:[%s293 + $0x10] sm:$0xff]
        %v321 = vld [vmem:[%s293 + $0x18] sm:$0xff]
        %v322 = vld [vmem:[%s293 + $0x20] sm:$0xff]
        %v323 = vld [vmem:[%s293 + $0x28] sm:$0xff]
        %v324 = vld [vmem:[%s293 + $0x30] sm:$0xff]
        %v325 = vld [vmem:[%s293 + $0x38] sm:$0xff]
        %v326 = vld [vmem:[%s293 + $0x40] sm:$0xff]
        %v327 = vld [vmem:[%s293 + $0x48] sm:$0xff]
        %v328 = vld [vmem:[%s293 + $0x50] sm:$0xff]
        %v329 = vld [vmem:[%s293 + $0x58] sm:$0xff]
        %v330 = vld [vmem:[%s293 + $0x60] sm:$0xff]
        %v331 = vld [vmem:[%s293 + $0x68] sm:$0xff]
        %v332 = vld [vmem:[%s293 + $0x70] sm:$0xff]
        %v333 = vld [vmem:[%s293 + $0x78] sm:$0xff]
        %v334 = vld [vmem:[%s303] sm:$0xff]
        %v335 = vld [vmem:[%s303 + $0x8] sm:$0xff]
        %v336 = vld [vmem:[%s303 + $0x10] sm:$0xff]
        %v337 = vld [vmem:[%s303 + $0x18] sm:$0xff]
        %v338 = vld [vmem:[%s303 + $0x20] sm:$0xff]
        %v339 = vld [vmem:[%s303 + $0x28] sm:$0xff]
        %v340 = vld [vmem:[%s303 + $0x30] sm:$0xff]
        %v341 = vld [vmem:[%s303 + $0x38] sm:$0xff]
        %v342 = vld [vmem:[%s303 + $0x40] sm:$0xff]
        %v343 = vld [vmem:[%s303 + $0x48] sm:$0xff]
        %v344 = vld [vmem:[%s303 + $0x50] sm:$0xff]
        %v345 = vld [vmem:[%s303 + $0x58] sm:$0xff]
        %v346 = vld [vmem:[%s303 + $0x60] sm:$0xff]
        %v347 = vld [vmem:[%s303 + $0x68] sm:$0xff]
        %v348 = vld [vmem:[%s303 + $0x70] sm:$0xff]
        %v349 = vld [vmem:[%s303 + $0x78] sm:$0xff]
        %351 = vset.pattern.permute.xlu0 0
        %352 = vperm.xlu0 %351, %v334
        %v353 = vpop.permute.xlu0 %352
        %356 = vset.pattern.permute.xlu0 0
        %357 = vperm.xlu0 %356, %v335
        %v358 = vpop.permute.xlu0 %357
        %361 = vset.pattern.permute.xlu0 0
        %362 = vperm.xlu0 %361, %v336
        %v363 = vpop.permute.xlu0 %362
        %366 = vset.pattern.permute.xlu0 0
        %367 = vperm.xlu0 %366, %v337
        %v368 = vpop.permute.xlu0 %367
        %371 = vset.pattern.permute.xlu0 0
        %372 = vperm.xlu0 %371, %v338
        %v373 = vpop.permute.xlu0 %372
        %376 = vset.pattern.permute.xlu0 0
        %377 = vperm.xlu0 %376, %v339
        %v378 = vpop.permute.xlu0 %377
        %381 = vset.pattern.permute.xlu0 0
        %382 = vperm.xlu0 %381, %v340
        %v383 = vpop.permute.xlu0 %382
        %386 = vset.pattern.permute.xlu0 0
        %387 = vperm.xlu0 %386, %v341
        %v388 = vpop.permute.xlu0 %387
        %391 = vset.pattern.permute.xlu0 0
        %392 = vperm.xlu0 %391, %v342
        %v393 = vpop.permute.xlu0 %392
        %396 = vset.pattern.permute.xlu0 0
        %397 = vperm.xlu0 %396, %v343
        %v398 = vpop.permute.xlu0 %397
        %401 = vset.pattern.permute.xlu0 0
        %402 = vperm.xlu0 %401, %v344
        %v403 = vpop.permute.xlu0 %402
        %406 = vset.pattern.permute.xlu0 0
        %407 = vperm.xlu0 %406, %v345
        %v408 = vpop.permute.xlu0 %407
        %411 = vset.pattern.permute.xlu0 0
        %412 = vperm.xlu0 %411, %v346
        %v413 = vpop.permute.xlu0 %412
        %416 = vset.pattern.permute.xlu0 0
        %417 = vperm.xlu0 %416, %v347
        %v418 = vpop.permute.xlu0 %417
        %421 = vset.pattern.permute.xlu0 0
        %422 = vperm.xlu0 %421, %v348
        %v423 = vpop.permute.xlu0 %422
        %426 = vset.pattern.permute.xlu0 0
        %427 = vperm.xlu0 %426, %v349
        %v428 = vpop.permute.xlu0 %427
        %v431 = vlaneseq
        %v432 = vshrl.u32 %v431, 7
        %v433 = vsub.s32 0, %v432
        %v434 = vrot.slane %v316, %v433
        %v436 = vmul.f32 %v353, %v434
        %v437 = vmul.f32 %v358, %v434
        %v438 = vmul.f32 %v363, %v434
        %v439 = vmul.f32 %v368, %v434
        %v440 = vmul.f32 %v373, %v434
        %v441 = vmul.f32 %v378, %v434
        %v442 = vmul.f32 %v383, %v434
        %v443 = vmul.f32 %v388, %v434
        %v444 = vmul.f32 %v393, %v434
        %v445 = vmul.f32 %v398, %v434
        %v446 = vmul.f32 %v403, %v434
        %v447 = vmul.f32 %v408, %v434
        %v448 = vmul.f32 %v413, %v434
        %v449 = vmul.f32 %v418, %v434
        %v450 = vmul.f32 %v423, %v434
        %v451 = vmul.f32 %v428, %v434
        %453 = vset.pattern.permute.xlu0 0
        %454 = vperm.xlu0 %453, %v318
        %v455 = vpop.permute.xlu0 %454
        %458 = vset.pattern.permute.xlu0 0
        %459 = vperm.xlu0 %458, %v319
        %v460 = vpop.permute.xlu0 %459
        %463 = vset.pattern.permute.xlu0 0
        %464 = vperm.xlu0 %463, %v320
        %v465 = vpop.permute.xlu0 %464
        %468 = vset.pattern.permute.xlu0 0
        %469 = vperm.xlu0 %468, %v321
        %v470 = vpop.permute.xlu0 %469
        %473 = vset.pattern.permute.xlu0 0
        %474 = vperm.xlu0 %473, %v322
        %v475 = vpop.permute.xlu0 %474
        %478 = vset.pattern.permute.xlu0 0
        %479 = vperm.xlu0 %478, %v323
        %v480 = vpop.permute.xlu0 %479
        %483 = vset.pattern.permute.xlu0 0
        %484 = vperm.xlu0 %483, %v324
        %v485 = vpop.permute.xlu0 %484
        %488 = vset.pattern.permute.xlu0 0
        %489 = vperm.xlu0 %488, %v325
        %v490 = vpop.permute.xlu0 %489
        %493 = vset.pattern.permute.xlu0 0
        %494 = vperm.xlu0 %493, %v326
        %v495 = vpop.permute.xlu0 %494
        %498 = vset.pattern.permute.xlu0 0
        %499 = vperm.xlu0 %498, %v327
        %v500 = vpop.permute.xlu0 %499
        %503 = vset.pattern.permute.xlu0 0
        %504 = vperm.xlu0 %503, %v328
        %v505 = vpop.permute.xlu0 %504
        %508 = vset.pattern.permute.xlu0 0
        %509 = vperm.xlu0 %508, %v329
        %v510 = vpop.permute.xlu0 %509
        %513 = vset.pattern.permute.xlu0 0
        %514 = vperm.xlu0 %513, %v330
        %v515 = vpop.permute.xlu0 %514
        %518 = vset.pattern.permute.xlu0 0
        %519 = vperm.xlu0 %518, %v331
        %v520 = vpop.permute.xlu0 %519
        %523 = vset.pattern.permute.xlu0 0
        %524 = vperm.xlu0 %523, %v332
        %v525 = vpop.permute.xlu0 %524
        %528 = vset.pattern.permute.xlu0 0
        %529 = vperm.xlu0 %528, %v333
        %v530 = vpop.permute.xlu0 %529
        %v532 = vadd.f32 %v455, %v436
        %v533 = vadd.f32 %v460, %v437
        %v534 = vadd.f32 %v465, %v438
        %v535 = vadd.f32 %v470, %v439
        %v536 = vadd.f32 %v475, %v440
        %v537 = vadd.f32 %v480, %v441
        %v538 = vadd.f32 %v485, %v442
        %v539 = vadd.f32 %v490, %v443
        %v540 = vadd.f32 %v495, %v444
        %v541 = vadd.f32 %v500, %v445
        %v542 = vadd.f32 %v505, %v446
        %v543 = vadd.f32 %v510, %v447
        %v544 = vadd.f32 %v515, %v448
        %v545 = vadd.f32 %v520, %v449
        %v546 = vadd.f32 %v525, %v450
        %v547 = vadd.f32 %v530, %v451
        %v549 = vlaneseq
        %v550 = vshrl.u32 %v549, 7
        %v551 = vsub.s32 0, %v550
        %v552 = vrot.slane %v317, %v551
        %v554 = vadd.f32 %v532, %v552
        %v555 = vadd.f32 %v533, %v552
        %v556 = vadd.f32 %v534, %v552
        %v557 = vadd.f32 %v535, %v552
        %v558 = vadd.f32 %v536, %v552
        %v559 = vadd.f32 %v537, %v552
        %v560 = vadd.f32 %v538, %v552
        %v561 = vadd.f32 %v539, %v552
        %v562 = vadd.f32 %v540, %v552
        %v563 = vadd.f32 %v541, %v552
        %v564 = vadd.f32 %v542, %v552
        %v565 = vadd.f32 %v543, %v552
        %v566 = vadd.f32 %v544, %v552
        %v567 = vadd.f32 %v545, %v552
        %v568 = vadd.f32 %v546, %v552
        %v569 = vadd.f32 %v547, %v552
        %v570 = vmul.f32 %v554, 1.442695
        %v571 = vpow.pop %v570
        %v572 = vmul.f32 %v555, 1.442695
        %v573 = vpow.pop %v572
        %v574 = vmul.f32 %v556, 1.442695
        %v575 = vpow.pop %v574
        %v576 = vmul.f32 %v557, 1.442695
        %v577 = vpow.pop %v576
        %v578 = vmul.f32 %v558, 1.442695
        %v579 = vpow.pop %v578
        %v580 = vmul.f32 %v559, 1.442695
        %v581 = vpow.pop %v580
        %v582 = vmul.f32 %v560, 1.442695
        %v583 = vpow.pop %v582
        %v584 = vmul.f32 %v561, 1.442695
        %v585 = vpow.pop %v584
        %v586 = vmul.f32 %v562, 1.442695
        %v587 = vpow.pop %v586
        %v588 = vmul.f32 %v563, 1.442695
        %v589 = vpow.pop %v588
        %v590 = vmul.f32 %v564, 1.442695
        %v591 = vpow.pop %v590
        %v592 = vmul.f32 %v565, 1.442695
        %v593 = vpow.pop %v592
        %v594 = vmul.f32 %v566, 1.442695
        %v595 = vpow.pop %v594
        %v596 = vmul.f32 %v567, 1.442695
        %v597 = vpow.pop %v596
        %v598 = vmul.f32 %v568, 1.442695
        %v599 = vpow.pop %v598
        %v600 = vmul.f32 %v569, 1.442695
        %v601 = vpow.pop %v600
        %v602 = vld [vmem:[%s284] sm:$0x1]
        %v603 = vld [vmem:[%s310] sm:$0x1]
        %604 = vmatprep.subr.mxu0 0.0
        %605 = vmatpush1.msra.mxu0 %v601
        %606 = vmatprep.subr.mxu0 0.0
        %607 = vmatpush1.msra.mxu0 %v599
        %608 = vmatprep.subr.mxu0 0.0
        %609 = vmatpush1.msra.mxu0 %v597
        %610 = vmatprep.subr.mxu0 0.0
        %611 = vmatpush1.msra.mxu0 %v595
        %612 = vmatprep.subr.mxu0 0.0
        %613 = vmatpush1.msra.mxu0 %v593
        %614 = vmatprep.subr.mxu0 0.0
        %615 = vmatpush1.msra.mxu0 %v591
        %616 = vmatprep.subr.mxu0 0.0
        %617 = vmatpush1.msra.mxu0 %v589
        %618 = vmatprep.subr.mxu0 0.0
        %619 = vmatpush1.msra.mxu0 %v587
        %620 = vmatprep.subr.mxu0 0.0
        %621 = vmatpush1.msra.mxu0 %v585
        %622 = vmatprep.subr.mxu0 0.0
        %623 = vmatpush1.msra.mxu0 %v583
        %624 = vmatprep.subr.mxu0 0.0
        %625 = vmatpush1.msra.mxu0 %v581
        %626 = vmatprep.subr.mxu0 0.0
        %627 = vmatpush1.msra.mxu0 %v579
        %628 = vmatprep.subr.mxu0 0.0
        %629 = vmatpush1.msra.mxu0 %v577
        %630 = vmatprep.subr.mxu0 0.0
        %631 = vmatpush1.msra.mxu0 %v575
        %632 = vmatprep.subr.mxu0 0.0
        %633 = vmatpush1.msra.mxu0 %v573
        %634 = vmatprep.subr.mxu0 0.0
        %635 = vmatpush1.msra.mxu0 %v571
        %636 = vmatprep.subr.mxu0 0.0
        %637 = vmatpush2.msra.mxu0 0.0
        %638 = vmatprep.subr.mxu0 0.0
        %639 = vmatpush2.msra.mxu0 0.0
        %640 = vmatprep.subr.mxu0 0.0
        %641 = vmatpush2.msra.mxu0 0.0
        %642 = vmatprep.subr.mxu0 0.0
        %643 = vmatpush2.msra.mxu0 0.0
        %644 = vmatprep.subr.mxu0 0.0
        %645 = vmatpush2.msra.mxu0 0.0
        %646 = vmatprep.subr.mxu0 0.0
        %647 = vmatpush2.msra.mxu0 0.0
        %648 = vmatprep.subr.mxu0 0.0
        %649 = vmatpush2.msra.mxu0 0.0
        %650 = vmatprep.subr.mxu0 0.0
        %651 = vmatpush2.msra.mxu0 0.0
        %652 = vmatprep.subr.mxu0 0.0
        %653 = vmatpush2.msra.mxu0 0.0
        %654 = vmatprep.subr.mxu0 0.0
        %655 = vmatpush2.msra.mxu0 0.0
        %656 = vmatprep.subr.mxu0 0.0
        %657 = vmatpush2.msra.mxu0 0.0
        %658 = vmatprep.subr.mxu0 0.0
        %659 = vmatpush2.msra.mxu0 0.0
        %660 = vmatprep.subr.mxu0 0.0
        %661 = vmatpush2.msra.mxu0 0.0
        %662 = vmatprep.subr.mxu0 0.0
        %663 = vmatpush2.msra.mxu0 0.0
        %664 = vmatprep.subr.mxu0 0.0
        %665 = vmatpush2.msra.mxu0 0.0
        %666 = vmatprep.subr.mxu0 0.0
        %667 = vmatpush2.msra.mxu0 0.0
        %668 = vmatprep.mubr.f32.mxu0 0.0
        %669 = vmatmul.mubr.f32.gmra.mxu0 %v603
        %v670 = vpop.f32.mrf.mxu0
        %v671 = vadd.f32 0.0, %v670
        %v672 = vpop.f32.mrf.mxu0
        %673 = vdwg.mxu0
        %v674 = vadd.f32 %v602, %v671
        %675 = vst [vmem:[%s284] sm:$0x1] %v674
        %s676 = sand.u32 %s165, 1
        %s677 = scalar_lea.sflag [#allocation3], %s676
        %s678 = sand.u32 %s165, 1
        %s679 = scalar_lea.vmem [#allocation2], %s678
        // Predicated region
        $region45: #{tpu_custom_call.1} parent=39 // pred_check
          %p680 = pneg %p175
        $region46: #{tpu_custom_call.1} parent=39 // pred_check_branch
          %682 = sbr.rel (%p680) target = $region48
        $region47: #{tpu_custom_call.1} parent=39 // pred_region
          %s684 = ssub.s32 16, 16
          %685 = vsyncadd %s677, %s684
          %s686 = smul.addr %s23, 16
          %s687 = scalar_lea.hbm %s5, %s686
          %s689 = sshll.u32 %s679, 4
          %s690 = int_to_ptr.vmem [resolvable:$true] %s689
          %692 = dma.vmem_to_hbm [thread:$0]  %s690, 16, %s687, %s677
        $region48: #{tpu_custom_call.1} parent=39 // pred_fallthru
          _
      $region40: #{tpu_custom_call.1} parent=5 // pred_fallthru
        _
      %p693 = scmp.le.s32.totalorder 2, %s14
      // Predicated region
      $region49: #{tpu_custom_call.1} parent=5 // pred_check
        %p694 = pneg %p693
      $region50: #{tpu_custom_call.1} parent=5 // pred_check_branch
        %696 = sbr.rel (%p694) target = $region52
      $region51: #{tpu_custom_call.1} parent=5 // pred_region
        %s697 = ssub.s32 %s14, 2
        // Predicated region
        $region53: #{tpu_custom_call.1} parent=51 // pred_check
          %p698 = pneg %p181
        $region54: #{tpu_custom_call.1} parent=51 // pred_check_branch
          %700 = sbr.rel (%p698) target = $region56
        $region55: #{tpu_custom_call.1} parent=51 // pred_region
          %s701 = sand.u32 %s166, 1
          %s702 = scalar_lea.sflag [#allocation3], %s701
          %s703 = sand.u32 %s166, 1
          %s704 = scalar_lea.vmem [#allocation2], %s703
          %705 = dma.done %s702, 16
        $region56: #{tpu_custom_call.1} parent=51 // pred_fallthru
          _
      $region52: #{tpu_custom_call.1} parent=5 // pred_fallthru
        _
    $region6: #{tpu_custom_call.1} parent=1 // loop_footer
      %s18 = sadd.s32 1, %s14
    $region7: #{tpu_custom_call.1} parent=1 // loop_footer_branch
      %13 = sbr.rel target = $region3
    $region8: #{tpu_custom_call.1} parent=1 // loop_exit
      _
    %706 = vsyncpa [#allocation3], 1
    %s707 = scalar_lea.sflag [#allocation3], 1
    %708 = vsyncpa %s707, 1

</llo_original>
